<compile_context>
chip_gen: v6e
topology: v6e:2x2x1
jax: 0.10.0
libtpu: 0.0.40
codegen_flags: <defaults>
</compile_context>

<pallas_src>
import functools
import math

import numpy as np

import jax
import jax.numpy as jnp
from jax.experimental import pallas as pl
from jax.experimental.pallas import tpu as pltpu


def _round_up(x: int, m: int) -> int:
    return (x + m - 1) // m * m


@functools.lru_cache(maxsize=None)
def _freq_phase_table(dim: int, dim_p: int):
    """(2, dim_p) f32 constant: row 0 = freqs tiled [f, f, 0...], row 1 = phase [0, pi/2, 0...].

    sin(t*f + 0) = sin(t*f) for the first half, sin(t*f + pi/2) = cos(t*f) for the
    second half, and sin(0) = 0 on the zero-padded lanes (also killed by zero W1 rows).
    """
    half_dim = dim // 2
    denom = max(half_dim - 1, 1)  # guard dim == 2
    scale = math.log(10000.0) / denom
    f = np.exp(np.arange(half_dim, dtype=np.float32) * -scale)  # (half_dim,)
    tab = np.zeros((2, dim_p), dtype=np.float32)
    tab[0, :half_dim] = f                      # sin lanes: freq
    tab[0, half_dim:dim] = f                   # cos lanes: freq
    tab[1, half_dim:dim] = np.float32(np.pi / 2.0)  # cos lanes: +pi/2 phase
    return jnp.asarray(tab)


def _pad2(x, rows, cols, dtype):
    """Cast + zero-pad a 2-D array to (rows, cols); no-op reshuffle if already aligned."""
    x = x.astype(dtype)
    r, c = x.shape
    if r == rows and c == cols:
        return x
    return jnp.zeros((rows, cols), dtype).at[:r, :c].set(x)


def time_embedding_kernel(t_ref, tab_ref, w1_ref, b1_ref, w2_ref, b2_ref, out_ref):
    # t_ref:    (tb, 1)        f32
    # tab_ref:  (2, dim_p)     f32   row 0 = freqs, row 1 = phase
    # w1_ref:   (dim_p, hid_p) bf16  (zero-padded)
    # b1_ref:   (1, hid_p)     f32
    # w2_ref:   (hid_p, dim_p) bf16  (zero-padded)
    # b2_ref:   (1, dim_p)     f32
    # out_ref:  (tb, dim_p)    f32
    t = t_ref[...]                              # (tb, 1)
    freqs = tab_ref[0:1, :]                     # (1, dim_p)
    phase = tab_ref[1:2, :]                     # (1, dim_p)

    # Single EUP pass: sin(t*f) on the first half, cos(t*f) via +pi/2 on the second.
    emb = jnp.sin(t * freqs + phase)            # (tb, dim_p) f32

    # Linear(dim, 4*dim) + SiLU  (bf16 MXU inputs, f32 accumulation)
    h = jnp.dot(emb.astype(jnp.bfloat16), w1_ref[...],
                preferred_element_type=jnp.float32) + b1_ref[...]
    h = h * jax.nn.sigmoid(h)                   # SiLU in f32 (EUP)

    # Linear(4*dim, dim)
    out = jnp.dot(h.astype(jnp.bfloat16), w2_ref[...],
                  preferred_element_type=jnp.float32) + b2_ref[...]
    out_ref[...] = out                          # lane-dense (dim_p multiple of 128)


def time_embedding(t, w1, b1, w2, b2, dim):
    """t: (B,) -> (B, dim) f32. w1: (dim, 4*dim), b1: (4*dim,), w2: (4*dim, dim), b2: (dim,)."""
    B = t.shape[0]
    hid = 4 * dim
    dim_p = _round_up(dim, 128)
    hid_p = _round_up(hid, 128)

    # Batch tiling: one tile for small B; 256-row tiles (multiple of 8, MXU-friendly)
    # with a parallel grid once B grows.
    B8 = _round_up(B, 8)
    if B8 <= 512:
        tb = B8
        B_p = B8
    else:
        tb = 256
        B_p = _round_up(B, tb)

    tab = _freq_phase_table(dim, dim_p)         # (2, dim_p) f32 constant

    # Lane/sublane-aligned operands; weights in bf16 (half HBM->VMEM bytes, native MXU dtype).
    t2 = _pad2(t.reshape(B, 1), B_p, 1, jnp.float32)
    w1_p = _pad2(w1, dim_p, hid_p, jnp.bfloat16)
    b1_p = _pad2(b1.reshape(1, hid), 1, hid_p, jnp.float32)
    w2_p = _pad2(w2, hid_p, dim_p, jnp.bfloat16)
    b2_p = _pad2(b2.reshape(1, dim), 1, dim_p, jnp.float32)

    out = pl.pallas_call(
        time_embedding_kernel,
        out_shape=jax.ShapeDtypeStruct((B_p, dim_p), jnp.float32),
        grid=(B_p // tb,),
        in_specs=[
            pl.BlockSpec((tb, 1), lambda i: (i, 0)),           # t (tiled over batch)
            pl.BlockSpec((2, dim_p), lambda i: (0, 0)),        # freq/phase table (resident)
            pl.BlockSpec((dim_p, hid_p), lambda i: (0, 0)),    # w1
            pl.BlockSpec((1, hid_p), lambda i: (0, 0)),        # b1
            pl.BlockSpec((hid_p, dim_p), lambda i: (0, 0)),    # w2
            pl.BlockSpec((1, dim_p), lambda i: (0, 0)),        # b2
        ],
        out_specs=pl.BlockSpec((tb, dim_p), lambda i: (i, 0)),
        compiler_params=pltpu.CompilerParams(dimension_semantics=("parallel",)),
    )(t2, tab, w1_p, b1_p, w2_p, b2_p)

    return out[:B, :dim]
    # TODO(synk): at B=8/dim=32 this op is launch/DMA-bound — fuse into the
    # consumer (or batch multiple timestep vectors) for real MXU utilization.


def reference_time_embedding(t, w1, b1, w2, b2, dim):
    """Pure-JAX f32 reference mirroring the PyTorch forward."""
    half_dim = dim // 2
    scale = math.log(10000.0) / (half_dim - 1)
    freqs = jnp.exp(jnp.arange(half_dim, dtype=jnp.float32) * -scale)
    emb = t[:, None] * freqs[None, :]
    emb = jnp.concatenate([jnp.sin(emb), jnp.cos(emb)], axis=-1)
    h = emb @ w1 + b1
    h = h * jax.nn.sigmoid(h)
    return h @ w2 + b2


if __name__ == "__main__":
    dim = 32          # TimeEmbedding(dim=32)
    B = 8             # small batch of timesteps

    key = jax.random.PRNGKey(0)
    k_t, k_w1, k_b1, k_w2, k_b2 = jax.random.split(key, 5)

    # Deterministic synthetic parameters (Linear weights stored as (in, out)).
    t = jax.random.uniform(k_t, (B,), jnp.float32, minval=0.0, maxval=1000.0)
    w1 = jax.random.normal(k_w1, (dim, 4 * dim), jnp.float32) * 0.02
    b1 = jax.random.normal(k_b1, (4 * dim,), jnp.float32) * 0.01
    w2 = jax.random.normal(k_w2, (4 * dim, dim), jnp.float32) * 0.02
    b2 = jax.random.normal(k_b2, (dim,), jnp.float32) * 0.01

    # jit the wrapper so padding / table glue constant-folds into one program.
    time_embedding_jit = jax.jit(time_embedding, static_argnums=(5,))

    out = time_embedding_jit(t, w1, b1, w2, b2, dim)
    out = jax.block_until_ready(out)

    ref = reference_time_embedding(t, w1, b1, w2, b2, dim)
    assert out.shape == (B, dim)
    # bf16 MXU inputs with f32 accumulation -> loosened tolerance vs f32 reference.
    assert jnp.allclose(out, ref, atol=2e-2, rtol=2e-2), "mismatch vs reference"

    print("KERNEL_OK")
</pallas_src>

<mosaic_0001>
module attributes {stable_mosaic.version = 11 : i64} {
  func.func @time_embedding_kernel(%arg0: i32, %arg1: memref<8x1xf32, #tpu.memory_space<vmem>>, %arg2: memref<2x128xf32, #tpu.memory_space<vmem>>, %arg3: memref<128x128xbf16, #tpu.memory_space<vmem>>, %arg4: memref<1x128xf32, #tpu.memory_space<vmem>>, %arg5: memref<128x128xbf16, #tpu.memory_space<vmem>>, %arg6: memref<1x128xf32, #tpu.memory_space<vmem>>, %arg7: memref<8x128xf32, #tpu.memory_space<vmem>>) attributes {dimension_semantics = [#tpu.dimension_semantics<parallel>], iteration_bounds = array<i64: 1>, scalar_prefetch = 0 : i64, scratch_operands = 0 : i64, tpu.core_type = #tpu.core_type<tc>, window_params = [{transform_indices = @transform_0, window_bounds = array<i64: 8, 1>}, {pipeline_mode = #tpu.pipeline_mode<synchronous>, transform_indices = @transform_1, window_bounds = array<i64: 2, 128>}, {pipeline_mode = #tpu.pipeline_mode<synchronous>, transform_indices = @transform_2, window_bounds = array<i64: 128, 128>}, {pipeline_mode = #tpu.pipeline_mode<synchronous>, transform_indices = @transform_3, window_bounds = array<i64: 1, 128>}, {pipeline_mode = #tpu.pipeline_mode<synchronous>, transform_indices = @transform_4, window_bounds = array<i64: 128, 128>}, {pipeline_mode = #tpu.pipeline_mode<synchronous>, transform_indices = @transform_5, window_bounds = array<i64: 1, 128>}, {transform_indices = @transform_6, window_bounds = array<i64: 8, 128>}]} {
    %c0 = arith.constant 0 : index
    %c0_0 = arith.constant 0 : index
    %0 = vector.load %arg1[%c0, %c0_0] : memref<8x1xf32, #tpu.memory_space<vmem>>, vector<8x1xf32>
    %c0_1 = arith.constant 0 : index
    %c0_2 = arith.constant 0 : index
    %1 = vector.load %arg2[%c0_1, %c0_2] : memref<2x128xf32, #tpu.memory_space<vmem>>, vector<1x128xf32>
    %c1 = arith.constant 1 : index
    %c0_3 = arith.constant 0 : index
    %2 = vector.load %arg2[%c1, %c0_3] : memref<2x128xf32, #tpu.memory_space<vmem>>, vector<1x128xf32>
    %3 = vector.broadcast %0 : vector<8x1xf32> to vector<8x128xf32>
    %4 = vector.broadcast %1 : vector<1x128xf32> to vector<8x128xf32>
    %5 = arith.mulf %3, %4 : vector<8x128xf32>
    %6 = vector.broadcast %2 : vector<1x128xf32> to vector<8x128xf32>
    %7 = arith.addf %5, %6 : vector<8x128xf32>
    %8 = math.sin %7 : vector<8x128xf32>
    %9 = arith.truncf %8 : vector<8x128xf32> to vector<8x128xbf16>
    %c0_4 = arith.constant 0 : index
    %c0_5 = arith.constant 0 : index
    %10 = vector.load %arg3[%c0_4, %c0_5] : memref<128x128xbf16, #tpu.memory_space<vmem>>, vector<128x128xbf16>
    %cst = arith.constant dense<0.000000e+00> : vector<8x128xf32>
    %11 = tpu.matmul %9, %10, %cst {dimension_numbers = #tpu.dot_dimension_numbers<[1], [0], [0], [1], [0, 0, 1, 1], [], []>} : vector<8x128xbf16>, vector<128x128xbf16>, vector<8x128xf32> -> vector<8x128xf32>
    %c0_6 = arith.constant 0 : index
    %c0_7 = arith.constant 0 : index
    %12 = vector.load %arg4[%c0_6, %c0_7] : memref<1x128xf32, #tpu.memory_space<vmem>>, vector<1x128xf32>
    %13 = vector.broadcast %12 : vector<1x128xf32> to vector<8x128xf32>
    %14 = arith.addf %11, %13 : vector<8x128xf32>
    %15 = arith.negf %14 : vector<8x128xf32>
    %16 = math.exp %15 : vector<8x128xf32>
    %cst_8 = arith.constant 1.000000e+00 : f32
    %17 = vector.broadcast %cst_8 : f32 to vector<8x128xf32>
    %18 = arith.addf %17, %16 : vector<8x128xf32>
    %19 = arith.divf %17, %18 : vector<8x128xf32>
    %20 = arith.mulf %14, %19 : vector<8x128xf32>
    %21 = arith.truncf %20 : vector<8x128xf32> to vector<8x128xbf16>
    %c0_9 = arith.constant 0 : index
    %c0_10 = arith.constant 0 : index
    %22 = vector.load %arg5[%c0_9, %c0_10] : memref<128x128xbf16, #tpu.memory_space<vmem>>, vector<128x128xbf16>
    %cst_11 = arith.constant dense<0.000000e+00> : vector<8x128xf32>
    %23 = tpu.matmul %21, %22, %cst_11 {dimension_numbers = #tpu.dot_dimension_numbers<[1], [0], [0], [1], [0, 0, 1, 1], [], []>} : vector<8x128xbf16>, vector<128x128xbf16>, vector<8x128xf32> -> vector<8x128xf32>
    %c0_12 = arith.constant 0 : index
    %c0_13 = arith.constant 0 : index
    %24 = vector.load %arg6[%c0_12, %c0_13] : memref<1x128xf32, #tpu.memory_space<vmem>>, vector<1x128xf32>
    %25 = vector.broadcast %24 : vector<1x128xf32> to vector<8x128xf32>
    %26 = arith.addf %23, %25 : vector<8x128xf32>
    %c0_14 = arith.constant 0 : index
    %c0_15 = arith.constant 0 : index
    %27 = vector.load %arg7[%c0_14, %c0_15] : memref<8x128xf32, #tpu.memory_space<vmem>>, vector<8x128xf32>
    tpu.vector_store %arg7[%c0_14, %c0_15], %26 {strides = array<i32>} : memref<8x128xf32, #tpu.memory_space<vmem>>, vector<8x128xf32>,
    return
  }
  func.func @transform_0(%arg0: i32) -> (i32, i32) {
    %c0_i32 = arith.constant 0 : i32
    %c0_i32_0 = arith.constant 0 : i32
    return %arg0, %c0_i32 : i32, i32
  }
  func.func @transform_1(%arg0: i32) -> (i32, i32) {
    %c0_i32 = arith.constant 0 : i32
    %c0_i32_0 = arith.constant 0 : i32
    %c0_i32_1 = arith.constant 0 : i32
    return %c0_i32, %c0_i32_0 : i32, i32
  }
  func.func @transform_2(%arg0: i32) -> (i32, i32) {
    %c0_i32 = arith.constant 0 : i32
    %c0_i32_0 = arith.constant 0 : i32
    %c0_i32_1 = arith.constant 0 : i32
    return %c0_i32, %c0_i32_0 : i32, i32
  }
  func.func @transform_3(%arg0: i32) -> (i32, i32) {
    %c0_i32 = arith.constant 0 : i32
    %c0_i32_0 = arith.constant 0 : i32
    %c0_i32_1 = arith.constant 0 : i32
    return %c0_i32, %c0_i32_0 : i32, i32
  }
  func.func @transform_4(%arg0: i32) -> (i32, i32) {
    %c0_i32 = arith.constant 0 : i32
    %c0_i32_0 = arith.constant 0 : i32
    %c0_i32_1 = arith.constant 0 : i32
    return %c0_i32, %c0_i32_0 : i32, i32
  }
  func.func @transform_5(%arg0: i32) -> (i32, i32) {
    %c0_i32 = arith.constant 0 : i32
    %c0_i32_0 = arith.constant 0 : i32
    %c0_i32_1 = arith.constant 0 : i32
    return %c0_i32, %c0_i32_0 : i32, i32
  }
  func.func @transform_6(%arg0: i32) -> (i32, i32) {
    %c0_i32 = arith.constant 0 : i32
    %c0_i32_0 = arith.constant 0 : i32
    return %arg0, %c0_i32 : i32, i32
  }
}

</mosaic_0001>

<llo_original>
// kernel: time_embedding.1
$region0: #{time_embedding.1}
  #allocation0 [shape = 'u32[]', space=smem, size = 0x4, offset = 0x4, fixed_abs, tag = 'smem constant byte address 0x4 - core index']
  #allocation1 [shape = 'u32[144,128]{1,0:T(1,128)}', space=vmem, size = 0x12000, scoped, tag = 'internal scratch']
  %s0 = inlined_call_operand.vmem [shape: f32[8,1], index: 0, kind: input, shape index: {}]
  %s1 = inlined_call_operand.vmem [shape: f32[2,128], index: 1, kind: input, shape index: {}]
  %s2 = inlined_call_operand.vmem [shape: bf16[128,128], index: 2, kind: input, shape index: {}]
  %s3 = inlined_call_operand.vmem [shape: f32[1,128], index: 3, kind: input, shape index: {}]
  %s4 = inlined_call_operand.vmem [shape: bf16[128,128], index: 4, kind: input, shape index: {}]
  %s5 = inlined_call_operand.vmem [shape: f32[1,128], index: 5, kind: input, shape index: {}]
  %s6 = inlined_call_operand.hbm [shape: f32[8,128], index: 6, kind: output, shape index: {}]
  %s7 = sld [smem:[#allocation0]]
  $region34: #{time_embedding.1} parent=0
    _
  %s9 = ssub.s32 1, %s7
  %s10 = scalar_select 0, %s9, %s7
  $region1: #{time_embedding.1} parent=0
    #allocation2 [shape = 'u8[4096]{0}', space=vmem, size = 0x1000, scoped, tag = 'output window, operand 0, single buffered']
    #allocation3 [shape = 's32[1]{0}', space=sflag, size = 0x4, scoped, tag = 'scoped memory for time_embedding.1']
    %11 = vsyncpa [#allocation3], 0
    // Predicated region
    $region2: #{time_embedding.1} parent=1 // pred_check
      _
    $region3: #{time_embedding.1} parent=1 // pred_check_branch
      %13 = sbr.rel (0) target = $region5
    $region4: #{time_embedding.1} parent=1 // pred_region
      _
    $region5: #{time_embedding.1} parent=1 // pred_fallthru
      _
    // Predicated region
    $region6: #{time_embedding.1} parent=1 // pred_check
      _
    $region7: #{time_embedding.1} parent=1 // pred_check_branch
      %15 = sbr.rel (0) target = $region9
    $region8: #{time_embedding.1} parent=1 // pred_region
      _
    $region9: #{time_embedding.1} parent=1 // pred_fallthru
      _
    // Predicated region
    $region10: #{time_embedding.1} parent=1 // pred_check
      _
    $region11: #{time_embedding.1} parent=1 // pred_check_branch
      %17 = sbr.rel (0) target = $region13
    $region12: #{time_embedding.1} parent=1 // pred_region
      _
    $region13: #{time_embedding.1} parent=1 // pred_fallthru
      _
    // Predicated region
    $region14: #{time_embedding.1} parent=1 // pred_check
      _
    $region15: #{time_embedding.1} parent=1 // pred_check_branch
      %19 = sbr.rel (0) target = $region17
    $region16: #{time_embedding.1} parent=1 // pred_region
      _
    $region17: #{time_embedding.1} parent=1 // pred_fallthru
      _
    // Predicated region
    $region18: #{time_embedding.1} parent=1 // pred_check
      _
    $region19: #{time_embedding.1} parent=1 // pred_check_branch
      %21 = sbr.rel (0) target = $region21
    $region20: #{time_embedding.1} parent=1 // pred_region
      _
    $region21: #{time_embedding.1} parent=1 // pred_fallthru
      _
    // Predicated region
    $region22: #{time_embedding.1} parent=1 // pred_check
      _
    $region23: #{time_embedding.1} parent=1 // pred_check_branch
      %23 = sbr.rel (0) target = $region25
    $region24: #{time_embedding.1} parent=1 // pred_region
      _
    $region25: #{time_embedding.1} parent=1 // pred_fallthru
      _
    %v25 = vld [vmem:[%s0] sm:$0xff]
    %v26 = vld [vmem:[%s1] sm:$0x1]
    %v27 = vld [vmem:[%s1 + $0x1] sm:$0x1]
    %29 = vset.pattern.permute.xlu0 0
    %30 = vperm.xlu0 %29, %v25
    %v31 = vpop.permute.xlu0 %30
    %v33 = vlaneseq
    %v34 = vshrl.u32 %v33, 7
    %v35 = vsub.s32 0, %v34
    %v36 = vrot.slane %v26, %v35
    %v37 = vmul.f32 %v31, %v36
    %v38 = vlaneseq
    %v39 = vshrl.u32 %v38, 7
    %v40 = vsub.s32 0, %v39
    %v41 = vrot.slane %v27, %v40
    %v42 = vadd.f32 %v37, %v41
    %v43 = vand.u32 2147483647, %v42
    %vm44 = vcmp.le.f32.partialorder %v43, 0.7853982
    %vm45 = vcmp.lt.s32.totalorder %v42, 0
    %v46 = vand.u32 %v42, 2139095040
    %v47 = vshrl.u32 %v46, 23
    %v48 = vsub.s32 %v47, 127
    %v49 = vand.u32 2147483647, %v42
    %v50 = vand.u32 %v49, 8388607
    %v51 = vor.u32 %v50, 8388608
    %v52 = vsub.s32 0, %v51
    %v53 = vadd.s32 %v48, 1
    %vm54 = vcmp.gt.s32.totalorder %v53, 0
    %v55 = vsel %vm54, %v53, 0
    %v56 = vshrl.u32 %v55, 5
    %v57 = vand.u32 %v55, 31
    %v58 = vsub.s32 32, %v57
    %v59 = vshrl.u32 683565275, %v58
    %v60 = vshll.u32 683565275, %v57
    %v61 = vshrl.u32 2475754826, %v58
    %v62 = vor.u32 %v60, %v61
    %v63 = vshll.u32 2475754826, %v57
    %v64 = vshrl.u32 2131351028, %v58
    %v65 = vor.u32 %v63, %v64
    %v66 = vshll.u32 2131351028, %v57
    %v67 = vshrl.u32 2102212464, %v58
    %v68 = vor.u32 %v66, %v67
    %v69 = vshll.u32 2102212464, %v57
    %v70 = vshrl.u32 920167782, %v58
    %v71 = vor.u32 %v69, %v70
    %v72 = vshll.u32 920167782, %v57
    %v73 = vshrl.u32 1326507024, %v58
    %v74 = vor.u32 %v72, %v73
    %vm75 = vcmp.lt.s32.totalorder %v56, 1
    %vm76 = vcmp.lt.s32.totalorder %v56, 2
    %vm77 = vcmp.lt.s32.totalorder %v56, 3
    %vm78 = vcmp.lt.s32.totalorder %v56, 4
    %v79 = vsel %vm75, %v59, %v62
    %v80 = vsel %vm78, %v68, 2102212464
    %v81 = vsel %vm77, %v65, %v80
    %v82 = vsel %vm76, %v79, %v81
    %v83 = vsel %vm75, %v62, %v65
    %v84 = vsel %vm78, %v71, 920167782
    %v85 = vsel %vm77, %v68, %v84
    %v86 = vsel %vm76, %v83, %v85
    %v87 = vsel %vm75, %v65, %v68
    %v88 = vsel %vm78, %v74, 1326507024
    %v89 = vsel %vm77, %v71, %v88
    %v90 = vsel %vm76, %v87, %v89
    %v91 = vshll.u32 %v51, 8
    %v92 = vmul.u32.u64.compose %v91, %v90
    %v93 = vextract.low.u32 %v92
    %v94 = vextract.high.u32 %v92
    %v95 = vmul.u32.u64.compose %v91, %v86
    %v96 = vextract.low.u32 %v95
    %v97 = vextract.high.u32 %v95
    %v98 = vmul.u32 %v91, %v82
    %v99 = vadd.s32 %v94, %v96
    %vm100 = vc.u32 %v94, %v96
    %v101 = vadd.s32 %v97, 1
    %v102 = vsel %vm100, %v101, %v97
    %v103 = vadd.s32 %v98, %v102
    %v104 = vadd.s32 %v103, 536870912
    %v105 = vshrl.u32 %v104, 30
    %v106 = vshll.u32 %v105, 30
    %v107 = vsub.s32 %v103, %v106
    %vm108 = vcmp.lt.s32.totalorder %v107, 0
    %v109 = vsub.s32 0, %v107
    %v110 = vsel %vm108, %v109, %v107
    %v111 = vclz %v110
    %v112 = vsub.s32 %v111, 2
    %vm113 = vcmp.gt.s32.totalorder 0, %v112
    %v114 = vsel %vm113, 0, %v112
    %v115 = vsub.s32 32, %v114
    %v116 = vshll.u32 %v107, %v114
    %v117 = vshrl.u32 %v99, %v115
    %v118 = vor.u32 %v116, %v117
    %v119 = vsub.s32 4294967266, %v114
    %v120 = vadd.s32 %v119, 127
    %v121 = vshll.u32 %v120, 23
    %v122 = vor.u32 4788187, %v121
    %v123 = vand.u32 2147483647, %v122
    %v125 = vcvt.s32.f32 %v118
    %v126 = vmul.f32 %v125, %v123
    %v127 = vxor.u32 %v126, 2147483648
    %v128 = vsel %vm45, %v127, %v126
    %v129 = vsub.s32 4, %v105
    %v130 = vsel %vm45, %v129, %v105
    %v131 = vsel %vm44, %v42, %v128
    %v132 = vsel %vm44, 0, %v130
    %v133 = vcosq.f32.pop %v131
    %v134 = vsinq.f32.pop %v131
    %vm135 = vweird.f32 %v42
    %v136 = vadd.s32 %v132, 3
    %v137 = vand.u32 %v136, 3
    %vm138 = vcmp.lt.s32.totalorder %v137, 2
    %vm139 = vcmp.eq.s32.totalorder %v137, 0
    %v140 = vxor.u32 %v134, 2147483648
    %v141 = vsel %vm139, %v133, %v140
    %vm142 = vcmp.eq.s32.totalorder %v137, 2
    %v143 = vxor.u32 %v133, 2147483648
    %v144 = vsel %vm142, %v143, %v134
    %v145 = vsel %vm138, %v141, %v144
    %v146 = vsel %vm135, nan, %v145
    %v147 = vpack.c.bf16 %v146, %v146
    %v148 = vld [vmem:[%s2] sm:$0xf]
    %v149 = vld [vmem:[%s2 + $0x4] sm:$0xf]
    %v150 = vld [vmem:[%s2 + $0x8] sm:$0xf]
    %v151 = vld [vmem:[%s2 + $0xc] sm:$0xf]
    %v152 = vld [vmem:[%s2 + $0x10] sm:$0xf]
    %v153 = vld [vmem:[%s2 + $0x14] sm:$0xf]
    %v154 = vld [vmem:[%s2 + $0x18] sm:$0xf]
    %v155 = vld [vmem:[%s2 + $0x1c] sm:$0xf]
    %v156 = vld [vmem:[%s2 + $0x20] sm:$0xf]
    %v157 = vld [vmem:[%s2 + $0x24] sm:$0xf]
    %v158 = vld [vmem:[%s2 + $0x28] sm:$0xf]
    %v159 = vld [vmem:[%s2 + $0x2c] sm:$0xf]
    %v160 = vld [vmem:[%s2 + $0x30] sm:$0xf]
    %v161 = vld [vmem:[%s2 + $0x34] sm:$0xf]
    %v162 = vld [vmem:[%s2 + $0x38] sm:$0xf]
    %v163 = vld [vmem:[%s2 + $0x3c] sm:$0xf]
    %v164 = vld [vmem:[%s3] sm:$0x1]
    %v166 = vlaneseq
    %v167 = vshrl.u32 %v166, 7
    %v168 = vsub.s32 0, %v167
    %v169 = vrot.slane %v164, %v168
    %v187 = vunpack.c.l.b16 %v148
    %v188 = vunpack.c.l.b16 %v149
    %v189 = vunpack.c.l.b16 %v150
    %v190 = vunpack.c.l.b16 %v151
    %v191 = vunpack.c.l.b16 %v152
    %v192 = vunpack.c.l.b16 %v153
    %v193 = vunpack.c.l.b16 %v154
    %v194 = vunpack.c.l.b16 %v155
    %v195 = vunpack.c.l.b16 %v156
    %v196 = vunpack.c.l.b16 %v157
    %v197 = vunpack.c.l.b16 %v158
    %v198 = vunpack.c.l.b16 %v159
    %v199 = vunpack.c.l.b16 %v160
    %v200 = vunpack.c.l.b16 %v161
    %v201 = vunpack.c.l.b16 %v162
    %v202 = vunpack.c.l.b16 %v163
    %v203 = vpack.c.b16 %v188, %v187
    %v204 = vpack.c.b16 %v190, %v189
    %v205 = vpack.c.b16 %v192, %v191
    %v206 = vpack.c.b16 %v194, %v193
    %v207 = vpack.c.b16 %v196, %v195
    %v208 = vpack.c.b16 %v198, %v197
    %v209 = vpack.c.b16 %v200, %v199
    %v210 = vpack.c.b16 %v202, %v201
    %219 = vmatprep.subr.bf16.mxu0 0
    %220 = vmatpush1.bf16.msra.mxu0 %v210
    %221 = vmatprep.subr.bf16.mxu0 0
    %222 = vmatpush1.bf16.msra.mxu0 %v209
    %223 = vmatprep.subr.bf16.mxu0 0
    %224 = vmatpush1.bf16.msra.mxu0 %v208
    %225 = vmatprep.subr.bf16.mxu0 0
    %226 = vmatpush1.bf16.msra.mxu0 %v207
    %227 = vmatprep.subr.bf16.mxu0 0
    %228 = vmatpush1.bf16.msra.mxu0 %v206
    %229 = vmatprep.subr.bf16.mxu0 0
    %230 = vmatpush1.bf16.msra.mxu0 %v205
    %231 = vmatprep.subr.bf16.mxu0 0
    %232 = vmatpush1.bf16.msra.mxu0 %v204
    %233 = vmatprep.subr.bf16.mxu0 0
    %234 = vmatpush1.bf16.msra.mxu0 %v203
    %235 = vmatprep.subr.bf16.mxu0 0
    %236 = vmatpush2.bf16.msra.mxu0 0
    %237 = vmatprep.subr.bf16.mxu0 0
    %238 = vmatpush2.bf16.msra.mxu0 0
    %239 = vmatprep.subr.bf16.mxu0 0
    %240 = vmatpush2.bf16.msra.mxu0 0
    %241 = vmatprep.subr.bf16.mxu0 0
    %242 = vmatpush2.bf16.msra.mxu0 0
    %243 = vmatprep.subr.bf16.mxu0 0
    %244 = vmatpush2.bf16.msra.mxu0 0
    %245 = vmatprep.subr.bf16.mxu0 0
    %246 = vmatpush2.bf16.msra.mxu0 0
    %247 = vmatprep.subr.bf16.mxu0 0
    %248 = vmatpush2.bf16.msra.mxu0 0
    %249 = vmatprep.subr.bf16.mxu0 0
    %250 = vmatpush2.bf16.msra.mxu0 0
    %251 = vmatprep.mubr.bf16.mxu0 0
    %252 = vmatmul.mubr.bf16.gmra.mxu0 %v147
    %v253 = vpop.f32.mrf.mxu0
    %v254 = vadd.f32 %v169, %v253
    %v255 = vpop.f32.mrf.mxu0
    %v256 = vpop.f32.mrf.mxu0
    %v257 = vpop.f32.mrf.mxu0
    %258 = vdwg.mxu0
    %v259 = vxor.u32 %v254, 2147483648
    %v260 = vmul.f32 %v259, 1.442695
    %v261 = vpow.pop %v260
    %v262 = vadd.f32 %v261, 1.0
    %v263 = vrcp.pop %v262
    %v264 = vmul.f32 1.0, %v263
    %v265 = vmul.f32 %v254, %v264
    %v266 = vpack.c.bf16 %v265, %v265
    %v267 = vld [vmem:[%s4] sm:$0xf]
    %v268 = vld [vmem:[%s4 + $0x4] sm:$0xf]
    %v269 = vld [vmem:[%s4 + $0x8] sm:$0xf]
    %v270 = vld [vmem:[%s4 + $0xc] sm:$0xf]
    %v271 = vld [vmem:[%s4 + $0x10] sm:$0xf]
    %v272 = vld [vmem:[%s4 + $0x14] sm:$0xf]
    %v273 = vld [vmem:[%s4 + $0x18] sm:$0xf]
    %v274 = vld [vmem:[%s4 + $0x1c] sm:$0xf]
    %v275 = vld [vmem:[%s4 + $0x20] sm:$0xf]
    %v276 = vld [vmem:[%s4 + $0x24] sm:$0xf]
    %v277 = vld [vmem:[%s4 + $0x28] sm:$0xf]
    %v278 = vld [vmem:[%s4 + $0x2c] sm:$0xf]
    %v279 = vld [vmem:[%s4 + $0x30] sm:$0xf]
    %v280 = vld [vmem:[%s4 + $0x34] sm:$0xf]
    %v281 = vld [vmem:[%s4 + $0x38] sm:$0xf]
    %v282 = vld [vmem:[%s4 + $0x3c] sm:$0xf]
    %v283 = vld [vmem:[%s5] sm:$0x1]
    %v285 = vlaneseq
    %v286 = vshrl.u32 %v285, 7
    %v287 = vsub.s32 0, %v286
    %v288 = vrot.slane %v283, %v287
    %v306 = vunpack.c.l.b16 %v267
    %v307 = vunpack.c.l.b16 %v268
    %v308 = vunpack.c.l.b16 %v269
    %v309 = vunpack.c.l.b16 %v270
    %v310 = vunpack.c.l.b16 %v271
    %v311 = vunpack.c.l.b16 %v272
    %v312 = vunpack.c.l.b16 %v273
    %v313 = vunpack.c.l.b16 %v274
    %v314 = vunpack.c.l.b16 %v275
    %v315 = vunpack.c.l.b16 %v276
    %v316 = vunpack.c.l.b16 %v277
    %v317 = vunpack.c.l.b16 %v278
    %v318 = vunpack.c.l.b16 %v279
    %v319 = vunpack.c.l.b16 %v280
    %v320 = vunpack.c.l.b16 %v281
    %v321 = vunpack.c.l.b16 %v282
    %v322 = vpack.c.b16 %v307, %v306
    %v323 = vpack.c.b16 %v309, %v308
    %v324 = vpack.c.b16 %v311, %v310
    %v325 = vpack.c.b16 %v313, %v312
    %v326 = vpack.c.b16 %v315, %v314
    %v327 = vpack.c.b16 %v317, %v316
    %v328 = vpack.c.b16 %v319, %v318
    %v329 = vpack.c.b16 %v321, %v320
    %338 = vmatprep.subr.bf16.mxu0 0
    %339 = vmatpush1.bf16.msra.mxu0 %v329
    %340 = vmatprep.subr.bf16.mxu0 0
    %341 = vmatpush1.bf16.msra.mxu0 %v328
    %342 = vmatprep.subr.bf16.mxu0 0
    %343 = vmatpush1.bf16.msra.mxu0 %v327
    %344 = vmatprep.subr.bf16.mxu0 0
    %345 = vmatpush1.bf16.msra.mxu0 %v326
    %346 = vmatprep.subr.bf16.mxu0 0
    %347 = vmatpush1.bf16.msra.mxu0 %v325
    %348 = vmatprep.subr.bf16.mxu0 0
    %349 = vmatpush1.bf16.msra.mxu0 %v324
    %350 = vmatprep.subr.bf16.mxu0 0
    %351 = vmatpush1.bf16.msra.mxu0 %v323
    %352 = vmatprep.subr.bf16.mxu0 0
    %353 = vmatpush1.bf16.msra.mxu0 %v322
    %354 = vmatprep.subr.bf16.mxu0 0
    %355 = vmatpush2.bf16.msra.mxu0 0
    %356 = vmatprep.subr.bf16.mxu0 0
    %357 = vmatpush2.bf16.msra.mxu0 0
    %358 = vmatprep.subr.bf16.mxu0 0
    %359 = vmatpush2.bf16.msra.mxu0 0
    %360 = vmatprep.subr.bf16.mxu0 0
    %361 = vmatpush2.bf16.msra.mxu0 0
    %362 = vmatprep.subr.bf16.mxu0 0
    %363 = vmatpush2.bf16.msra.mxu0 0
    %364 = vmatprep.subr.bf16.mxu0 0
    %365 = vmatpush2.bf16.msra.mxu0 0
    %366 = vmatprep.subr.bf16.mxu0 0
    %367 = vmatpush2.bf16.msra.mxu0 0
    %368 = vmatprep.subr.bf16.mxu0 0
    %369 = vmatpush2.bf16.msra.mxu0 0
    %370 = vmatprep.mubr.bf16.mxu0 0
    %371 = vmatmul.mubr.bf16.gmra.mxu0 %v266
    %v372 = vpop.f32.mrf.mxu0
    %v373 = vadd.f32 %v288, %v372
    %v374 = vpop.f32.mrf.mxu0
    %v375 = vpop.f32.mrf.mxu0
    %v376 = vpop.f32.mrf.mxu0
    %377 = vdwg.mxu0
    %378 = vst [vmem:[#allocation2] sm:$0xff] %v373
    // Predicated region
    $region26: #{time_embedding.1} parent=1 // pred_check
      _
    $region27: #{time_embedding.1} parent=1 // pred_check_branch
      %380 = sbr.rel (0) target = $region29
    $region28: #{time_embedding.1} parent=1 // pred_region
      %s382 = ssub.s32 128, 128
      %383 = vsyncadd [#allocation3], %s382
      %s385 = sshll.u32 [#allocation2], 4
      %s386 = int_to_ptr.vmem [resolvable:$true] %s385
      %388 = dma.vmem_to_hbm [thread:$0]  %s386, 128, %s6, [#allocation3]
    $region29: #{time_embedding.1} parent=1 // pred_fallthru
      _
    // Predicated region
    $region30: #{time_embedding.1} parent=1 // pred_check
      _
    $region31: #{time_embedding.1} parent=1 // pred_check_branch
      %390 = sbr.rel (0) target = $region33
    $region32: #{time_embedding.1} parent=1 // pred_region
      %391 = dma.done [#allocation3], 128
    $region33: #{time_embedding.1} parent=1 // pred_fallthru
      _
    %392 = vsyncpa [#allocation3], 1

</llo_original>
